<compile_context>
chip_gen: v6e
topology: v6e:2x2x1
jax: 0.10.0
libtpu: 0.0.40
codegen_flags: <defaults>
</compile_context>

<pallas_src>
import functools

import jax
import jax.numpy as jnp
from jax.experimental import pallas as pl
from jax.experimental.pallas import tpu as pltpu


def _round_up(x: int, m: int) -> int:
    return (x + m - 1) // m * m


def _pad_and_tile_cols(dim: int):
    """Pad a lane-major (E or K) dim and pick the largest MXU-friendly tile."""
    if dim <= 128:
        return 128, 128
    padded = _round_up(dim, 256)          # 256-aligned: full MXU width on v6e/v7x
    for c in (512, 256):
        if padded % c == 0:
            return padded, c
    return padded, 256                    # unreachable (padded % 256 == 0)


def _pad_and_tile_rows(b: int):
    """Pad the batch (sublane) dim; small batches only need 16-row alignment."""
    if b <= 128:
        bp = _round_up(b, 16)             # bf16 sublane-pack friendly
        return bp, bp
    bp = _round_up(b, 128)
    for c in (512, 256, 128):
        if bp % c == 0:
            return bp, c
    return bp, 128                        # unreachable (bp % 128 == 0)


def _apply_dropout(y, i, j, seed, *, tm, tn, e_padded, keep_threshold,
                   inv_keep_rate):
    """Counter-based dropout: mask = f(global element index, seed).

    Identical mask regardless of tiling / grid order; pure uint32 VPU ops.
    """
    row = jax.lax.broadcasted_iota(jnp.int32, (tm, tn), 0) + i * tm
    col = jax.lax.broadcasted_iota(jnp.int32, (tm, tn), 1) + j * tn
    h = (row.astype(jnp.uint32) * jnp.uint32(e_padded)
         + col.astype(jnp.uint32))
    h = h + seed.astype(jnp.uint32)
    # murmur3 fmix32 finalizer: good avalanche, few VPU ops.
    h = h ^ (h >> jnp.uint32(16))
    h = h * jnp.uint32(0x85EBCA6B)
    h = h ^ (h >> jnp.uint32(13))
    h = h * jnp.uint32(0xC2B2AE35)
    h = h ^ (h >> jnp.uint32(16))
    keep = h >= jnp.uint32(keep_threshold)   # single unsigned compare
    return jnp.where(keep, y, jnp.float32(0.0)) * jnp.float32(inv_keep_rate)


def _classifier_kernel_fused(seed_ref, x_ref, w_ref, b_ref, o_ref, *,
                             tm, tn, e_padded, keep_threshold, inv_keep_rate,
                             apply_dropout):
    """Single-K-step case: no accumulator, no pl.when."""
    i = pl.program_id(0)
    j = pl.program_id(1)
    seed = seed_ref[0]

    y = jnp.dot(x_ref[...], w_ref[...], preferred_element_type=jnp.float32)
    y = y + b_ref[...]                       # bias broadcast over rows
    if apply_dropout:
        y = _apply_dropout(y, i, j, seed, tm=tm, tn=tn, e_padded=e_padded,
                           keep_threshold=keep_threshold,
                           inv_keep_rate=inv_keep_rate)
    o_ref[...] = y.astype(o_ref.dtype)


def _classifier_kernel_acc(seed_ref, x_ref, w_ref, b_ref, o_ref, acc_ref, *,
                           tm, tn, e_padded, keep_threshold, inv_keep_rate,
                           apply_dropout):
    """Multi-K-step case: f32 VMEM accumulator with pl.when init/finalize.

    NOTE: all pl.* primitives (program_id, num_programs) and scalar ref reads
    are hoisted to the top level so no pallas primitive lives inside a
    @pl.when body (required for the interpret/CPU fallback path).
    """
    i = pl.program_id(0)
    j = pl.program_id(1)
    k = pl.program_id(2)
    nk = pl.num_programs(2)
    seed = seed_ref[0]

    @pl.when(k == 0)
    def _init():
        acc_ref[...] = jnp.zeros_like(acc_ref)

    acc_ref[...] += jnp.dot(x_ref[...], w_ref[...],
                            preferred_element_type=jnp.float32)

    @pl.when(k == nk - 1)
    def _finalize():
        y = acc_ref[...] + b_ref[...]
        if apply_dropout:
            yy = _apply_dropout(y, i, j, seed, tm=tm, tn=tn, e_padded=e_padded,
                                keep_threshold=keep_threshold,
                                inv_keep_rate=inv_keep_rate)
        else:
            yy = y
        o_ref[...] = yy.astype(o_ref.dtype)


def classifier_forward(x, w, b, seed, *, rate=0.5, train=True):
    """x: [B, input_size], w: [input_size, E] (transpose of nn.Linear.weight),
    b: [E].  Returns dropout(x @ w + b): [B, E] float32."""
    B, IN = x.shape
    assert w.shape[0] == IN
    E = w.shape[1]

    # ---- padding & tile selection (lane-dense output, MXU-friendly tiles) ---
    Bp, tm = _pad_and_tile_rows(B)
    Ep, tn = _pad_and_tile_cols(E)
    Kp, tk = _pad_and_tile_cols(IN)

    compute_dtype = jnp.bfloat16            # native MXU dtype on v5e/v6e/v7x

    xp = x.astype(compute_dtype)
    if (Bp, Kp) != (B, IN):
        xp = jnp.pad(xp, ((0, Bp - B), (0, Kp - IN)))
    wp = w.astype(compute_dtype)
    if (Kp, Ep) != (IN, E):
        wp = jnp.pad(wp, ((0, Kp - IN), (0, Ep - E)))
    bp = b.astype(jnp.float32)
    if Ep != E:
        bp = jnp.pad(bp, (0, Ep - E))
    bp = bp.reshape(1, Ep)
    seed_arr = jnp.asarray([seed], dtype=jnp.int32)

    rate = float(rate)
    apply_dropout = bool(train) and rate > 0.0
    keep_threshold = min(int(round(rate * (1 << 32))), (1 << 32) - 1)
    if not apply_dropout:
        inv_keep_rate = 1.0
    elif rate >= 1.0:
        inv_keep_rate = 0.0                  # PyTorch p=1 -> all zeros (no inf)
    else:
        inv_keep_rate = 1.0 / (1.0 - rate)

    num_k = Kp // tk
    common = dict(tm=tm, tn=tn, e_padded=Ep, keep_threshold=keep_threshold,
                  inv_keep_rate=inv_keep_rate, apply_dropout=apply_dropout)

    cost = pl.CostEstimate(
        flops=2 * Bp * Kp * Ep,
        transcendentals=0,
        bytes_accessed=2 * (Bp * Kp + Kp * Ep) + 4 * Ep + 4 * Bp * Ep,
    )

    if num_k == 1:
        kernel = functools.partial(_classifier_kernel_fused, **common)
        grid_spec = pltpu.PrefetchScalarGridSpec(
            num_scalar_prefetch=1,                                 # seed -> SMEM
            grid=(Bp // tm, Ep // tn),
            in_specs=[
                pl.BlockSpec((tm, Kp), lambda i, j, s: (i, 0)),    # x tile
                pl.BlockSpec((Kp, tn), lambda i, j, s: (0, j)),    # W tile
                pl.BlockSpec((1, tn), lambda i, j, s: (0, j)),     # bias tile
            ],
            out_specs=pl.BlockSpec((tm, tn), lambda i, j, s: (i, j)),
            scratch_shapes=[],
        )
        dim_sem = ("parallel", "parallel")
    else:
        kernel = functools.partial(_classifier_kernel_acc, **common)
        grid_spec = pltpu.PrefetchScalarGridSpec(
            num_scalar_prefetch=1,
            grid=(Bp // tm, Ep // tn, num_k),                      # K last
            in_specs=[
                pl.BlockSpec((tm, tk), lambda i, j, k, s: (i, k)),
                pl.BlockSpec((tk, tn), lambda i, j, k, s: (k, j)),
                pl.BlockSpec((1, tn), lambda i, j, k, s: (0, j)),
            ],
            out_specs=pl.BlockSpec((tm, tn), lambda i, j, k, s: (i, j)),
            scratch_shapes=[pltpu.VMEM((tm, tn), jnp.float32)],    # f32 acc
        )
        dim_sem = ("parallel", "parallel", "arbitrary")

    out = pl.pallas_call(
        kernel,
        out_shape=jax.ShapeDtypeStruct((Bp, Ep), jnp.float32),
        grid_spec=grid_spec,
        compiler_params=pltpu.CompilerParams(
            dimension_semantics=dim_sem,
            vmem_limit_bytes=32 * 1024 * 1024,   # headroom, safe on v5e/v6e/v7x
        ),
        cost_estimate=cost,
    )(seed_arr, xp, wp, bp)

    if (Bp, Ep) != (B, E):
        out = out[:B, :E]
    return out


if __name__ == "__main__":
    # Shapes consistent with the module defaults:
    #   input_size=16, embedding_size=64, batch=8
    B, IN, EMB = 8, 16, 64
    RATE = 0.5

    key = jax.random.PRNGKey(0)
    kx, kw, kb = jax.random.split(key, 3)

    # Deterministic init matching nn.Linear's U(-1/sqrt(in), 1/sqrt(in)).
    bound = 1.0 / (IN ** 0.5)
    w = jax.random.uniform(kw, (IN, EMB), jnp.float32, minval=-bound, maxval=bound)
    b = jax.random.uniform(kb, (EMB,), jnp.float32, minval=-bound, maxval=bound)
    x = jax.random.normal(kx, (B, IN), jnp.float32)

    out = classifier_forward(x, w, b, seed=1234, rate=RATE, train=True)
    out = jax.block_until_ready(out)

    # Reference at matching precision (bf16 MXU operands, f32 accumulate).
    lin = jnp.dot(x.astype(jnp.bfloat16), w.astype(jnp.bfloat16),
                  preferred_element_type=jnp.float32) + b
    ref = lin / (1.0 - RATE)

    # Sanity checks: shape, kept entries match scaled linear output, dropped
    # entries are exactly zero, keep fraction statistically sane.
    kept = out != 0.0
    assert out.shape == (B, EMB)
    assert jnp.allclose(jnp.where(kept, out, 0.0), jnp.where(kept, ref, 0.0),
                        atol=2e-3, rtol=2e-3), "kept-entry mismatch"
    kept_frac = float(jnp.mean(kept.astype(jnp.float32)))
    assert 0.2 < kept_frac < 0.8, kept_frac

    # TODO(synk): dropout mask comes from a counter-based hash, not PyTorch's
    # RNG stream, so it is not bit-identical to torch's mask (same statistics).

    print("KERNEL_OK")
</pallas_src>

<mosaic_0001>
module attributes {stable_mosaic.version = 11 : i64} {
  func.func @_classifier_kernel_fused(%arg0: i32, %arg1: i32, %arg2: memref<1xi32, #tpu.memory_space<smem>>, %arg3: memref<16x128xbf16, #tpu.memory_space<vmem>>, %arg4: memref<128x128xbf16, #tpu.memory_space<vmem>>, %arg5: memref<1x128xf32, #tpu.memory_space<vmem>>, %arg6: memref<16x128xf32, #tpu.memory_space<vmem>>) attributes {dimension_semantics = [#tpu.dimension_semantics<parallel>, #tpu.dimension_semantics<parallel>], iteration_bounds = array<i64: 1, 1>, scalar_prefetch = 1 : i64, scratch_operands = 0 : i64, tpu.core_type = #tpu.core_type<tc>, window_params = [{transform_indices = @transform_0, window_bounds = array<i64: 16, 128>}, {transform_indices = @transform_1, window_bounds = array<i64: 128, 128>}, {transform_indices = @transform_2, window_bounds = array<i64: 1, 128>}, {transform_indices = @transform_3, window_bounds = array<i64: 16, 128>}]} {
    %c0 = arith.constant 0 : index
    %0 = memref.load %arg2[%c0] : memref<1xi32, #tpu.memory_space<smem>>
    %c0_0 = arith.constant 0 : index
    %c0_1 = arith.constant 0 : index
    %1 = vector.load %arg3[%c0_0, %c0_1] : memref<16x128xbf16, #tpu.memory_space<vmem>>, vector<16x128xbf16>
    %c0_2 = arith.constant 0 : index
    %c0_3 = arith.constant 0 : index
    %2 = vector.load %arg4[%c0_2, %c0_3] : memref<128x128xbf16, #tpu.memory_space<vmem>>, vector<128x128xbf16>
    %cst = arith.constant dense<0.000000e+00> : vector<16x128xf32>
    %3 = tpu.matmul %1, %2, %cst {dimension_numbers = #tpu.dot_dimension_numbers<[1], [0], [0], [1], [0, 0, 1, 1], [], []>} : vector<16x128xbf16>, vector<128x128xbf16>, vector<16x128xf32> -> vector<16x128xf32>
    %c0_4 = arith.constant 0 : index
    %c0_5 = arith.constant 0 : index
    %4 = vector.load %arg5[%c0_4, %c0_5] : memref<1x128xf32, #tpu.memory_space<vmem>>, vector<1x128xf32>
    %5 = vector.broadcast %4 : vector<1x128xf32> to vector<16x128xf32>
    %6 = arith.addf %3, %5 : vector<16x128xf32>
    %7 = tpu.iota {dimensions = array<i32: 0>} : vector<16x128xi32>
    %c16_i32 = arith.constant 16 : i32
    %8 = arith.muli %arg0, %c16_i32 : i32
    %9 = vector.broadcast %8 : i32 to vector<16x128xi32>
    %10 = arith.addi %7, %9 : vector<16x128xi32>
    %11 = tpu.iota {dimensions = array<i32: 1>} : vector<16x128xi32>
    %c128_i32 = arith.constant 128 : i32
    %12 = arith.muli %arg1, %c128_i32 : i32
    %13 = vector.broadcast %12 : i32 to vector<16x128xi32>
    %14 = arith.addi %11, %13 : vector<16x128xi32>
    %c128_i32_6 = arith.constant 128 : i32
    %15 = vector.broadcast %c128_i32_6 : i32 to vector<16x128xi32>
    %16 = arith.muli %10, %15 : vector<16x128xi32>
    %17 = arith.addi %16, %14 : vector<16x128xi32>
    %18 = vector.broadcast %0 : i32 to vector<16x128xi32>
    %19 = arith.addi %17, %18 : vector<16x128xi32>
    %c16_i32_7 = arith.constant 16 : i32
    %20 = vector.broadcast %c16_i32_7 : i32 to vector<16x128xi32>
    %21 = arith.shrui %19, %20 : vector<16x128xi32>
    %22 = arith.xori %19, %21 : vector<16x128xi32>
    %c-2048144789_i32 = arith.constant -2048144789 : i32
    %23 = vector.broadcast %c-2048144789_i32 : i32 to vector<16x128xi32>
    %24 = arith.muli %22, %23 : vector<16x128xi32>
    %c13_i32 = arith.constant 13 : i32
    %25 = vector.broadcast %c13_i32 : i32 to vector<16x128xi32>
    %26 = arith.shrui %24, %25 : vector<16x128xi32>
    %27 = arith.xori %24, %26 : vector<16x128xi32>
    %c-1028477387_i32 = arith.constant -1028477387 : i32
    %28 = vector.broadcast %c-1028477387_i32 : i32 to vector<16x128xi32>
    %29 = arith.muli %27, %28 : vector<16x128xi32>
    %c16_i32_8 = arith.constant 16 : i32
    %30 = vector.broadcast %c16_i32_8 : i32 to vector<16x128xi32>
    %31 = arith.shrui %29, %30 : vector<16x128xi32>
    %32 = arith.xori %29, %31 : vector<16x128xi32>
    %c-2147483648_i32 = arith.constant -2147483648 : i32
    %33 = vector.broadcast %c-2147483648_i32 : i32 to vector<16x128xi32>
    %34 = arith.cmpi uge, %32, %33 : vector<16x128xi32>
    %cst_9 = arith.constant 0.000000e+00 : f32
    %35 = vector.broadcast %cst_9 : f32 to vector<16x128xf32>
    %36 = arith.select %34, %6, %35 : vector<16x128xi1>, vector<16x128xf32>
    %cst_10 = arith.constant 2.000000e+00 : f32
    %37 = vector.broadcast %cst_10 : f32 to vector<16x128xf32>
    %38 = arith.mulf %36, %37 : vector<16x128xf32>
    %c0_11 = arith.constant 0 : index
    %c0_12 = arith.constant 0 : index
    %39 = vector.load %arg6[%c0_11, %c0_12] : memref<16x128xf32, #tpu.memory_space<vmem>>, vector<16x128xf32>
    tpu.vector_store %arg6[%c0_11, %c0_12], %38 {strides = array<i32>} : memref<16x128xf32, #tpu.memory_space<vmem>>, vector<16x128xf32>,
    return
  }
  func.func @transform_0(%arg0: i32, %arg1: i32, %arg2: memref<1xi32, #tpu.memory_space<smem>>) -> (i32, i32) {
    %c0_i32 = arith.constant 0 : i32
    %c0_i32_0 = arith.constant 0 : i32
    return %arg0, %c0_i32 : i32, i32
  }
  func.func @transform_1(%arg0: i32, %arg1: i32, %arg2: memref<1xi32, #tpu.memory_space<smem>>) -> (i32, i32) {
    %c0_i32 = arith.constant 0 : i32
    %c0_i32_0 = arith.constant 0 : i32
    return %c0_i32, %arg1 : i32, i32
  }
  func.func @transform_2(%arg0: i32, %arg1: i32, %arg2: memref<1xi32, #tpu.memory_space<smem>>) -> (i32, i32) {
    %c0_i32 = arith.constant 0 : i32
    %c0_i32_0 = arith.constant 0 : i32
    return %c0_i32, %arg1 : i32, i32
  }
  func.func @transform_3(%arg0: i32, %arg1: i32, %arg2: memref<1xi32, #tpu.memory_space<smem>>) -> (i32, i32) {
    %c0_i32 = arith.constant 0 : i32
    return %arg0, %arg1 : i32, i32
  }
}

</mosaic_0001>

<llo_original>
// kernel: tpu_custom_call.1
$region0: #{tpu_custom_call.1}
  #allocation0 [shape = 'u32[]', space=smem, size = 0x4, offset = 0x4, fixed_abs, tag = 'smem constant byte address 0x4 - core index']
  #allocation1 [shape = 'u32[144,128]{1,0:T(1,128)}', space=vmem, size = 0x12000, scoped, tag = 'internal scratch']
  #allocation2 [shape = 's32[1]{0}', space=sflag, size = 0x4, scoped, tag = 'scoped memory for tpu_custom_call.1']
  #allocation3 [shape = 's32[1]{0:T(128)S(6)}', space=smem, size = 0x200, scoped, tag = 'prefetched SMEM operand 0']
  %s0 = inlined_call_operand.<no memory space> [shape: s32[1], index: 0, kind: input, shape index: {}]
  %s1 = inlined_call_operand.hbm [shape: bf16[16,128], index: 1, kind: input, shape index: {}]
  %s2 = inlined_call_operand.hbm [shape: bf16[128,128], index: 2, kind: input, shape index: {}]
  %s3 = inlined_call_operand.vmem [shape: f32[1,128], index: 3, kind: input, shape index: {}]
  %s4 = inlined_call_operand.hbm [shape: f32[16,128], index: 4, kind: output, shape index: {}]
  %s5 = sld [smem:[#allocation0]]
  $region30: #{tpu_custom_call.1} parent=0
    _
  %s7 = ssub.s32 1, %s5
  %s8 = scalar_select 0, %s7, %s5
  %9 = sst [smem:[#allocation3]] %s0
  $region1: #{tpu_custom_call.1} parent=0
    #allocation4 [shape = 'u8[4096]{0}', space=vmem, size = 0x1000, scoped, tag = 'input window, operand 1, single buffered']
    #allocation5 [shape = 's32[1]{0}', space=sflag, size = 0x4, scoped, tag = 'scoped memory for tpu_custom_call.1']
    #allocation6 [shape = 's32[1]{0}', space=sflag, size = 0x4, scoped, tag = 'scoped memory for tpu_custom_call.1']
    #allocation7 [shape = 'u8[32768]{0}', space=vmem, size = 0x8000, scoped, tag = 'input window, operand 2, single buffered']
    #allocation8 [shape = 's32[1]{0}', space=sflag, size = 0x4, scoped, tag = 'scoped memory for tpu_custom_call.1']
    #allocation9 [shape = 'u8[8192]{0}', space=vmem, size = 0x2000, scoped, tag = 'output window, operand 0, single buffered']
    %10 = vsyncpa [#allocation5], 0
    %11 = vsyncpa [#allocation8], 0
    %12 = vsyncpa [#allocation6], 0
    // Predicated region
    $region2: #{tpu_custom_call.1} parent=1 // pred_check
      _
    $region3: #{tpu_custom_call.1} parent=1 // pred_check_branch
      %14 = sbr.rel (0) target = $region5
    $region4: #{tpu_custom_call.1} parent=1 // pred_region
      %s16 = ssub.s32 128, 128
      %17 = vsyncadd [#allocation5], %s16
      %s18 = sshll.u32 [#allocation4], 4
      %s19 = int_to_ptr.vmem [resolvable:$true] %s18
      %24 = dma.hbm_to_vmem [thread:$0]  %s1, 128, %s19, [#allocation5], 64, 64, 4
    $region5: #{tpu_custom_call.1} parent=1 // pred_fallthru
      _
    // Predicated region
    $region6: #{tpu_custom_call.1} parent=1 // pred_check
      _
    $region7: #{tpu_custom_call.1} parent=1 // pred_check_branch
      %26 = sbr.rel (0) target = $region9
    $region8: #{tpu_custom_call.1} parent=1 // pred_region
      %s28 = ssub.s32 1024, 1024
      %29 = vsyncadd [#allocation8], %s28
      %s30 = sshll.u32 [#allocation7], 4
      %s31 = int_to_ptr.vmem [resolvable:$true] %s30
      %36 = dma.hbm_to_vmem [thread:$0]  %s2, 1024, %s31, [#allocation8], 64, 64, 4
    $region9: #{tpu_custom_call.1} parent=1 // pred_fallthru
      _
    // Predicated region
    $region10: #{tpu_custom_call.1} parent=1 // pred_check
      _
    $region11: #{tpu_custom_call.1} parent=1 // pred_check_branch
      %38 = sbr.rel (0) target = $region13
    $region12: #{tpu_custom_call.1} parent=1 // pred_region
      _
    $region13: #{tpu_custom_call.1} parent=1 // pred_fallthru
      _
    // Predicated region
    $region14: #{tpu_custom_call.1} parent=1 // pred_check
      _
    $region15: #{tpu_custom_call.1} parent=1 // pred_check_branch
      %40 = sbr.rel (0) target = $region17
    $region16: #{tpu_custom_call.1} parent=1 // pred_region
      %41 = dma.done [#allocation5], 128
    $region17: #{tpu_custom_call.1} parent=1 // pred_fallthru
      _
    // Predicated region
    $region18: #{tpu_custom_call.1} parent=1 // pred_check
      _
    $region19: #{tpu_custom_call.1} parent=1 // pred_check_branch
      %43 = sbr.rel (0) target = $region21
    $region20: #{tpu_custom_call.1} parent=1 // pred_region
      %44 = dma.done [#allocation8], 1024
    $region21: #{tpu_custom_call.1} parent=1 // pred_fallthru
      _
    %s46 = sld [smem:[#allocation3]]
    %v47 = vld [vmem:[#allocation4] sm:$0xf]
    %v48 = vld [vmem:[#allocation4 + $0x4] sm:$0xf]
    %v49 = vld [vmem:[#allocation7] sm:$0xf]
    %v50 = vld [vmem:[#allocation7 + $0x4] sm:$0xf]
    %v51 = vld [vmem:[#allocation7 + $0x8] sm:$0xf]
    %v52 = vld [vmem:[#allocation7 + $0xc] sm:$0xf]
    %v53 = vld [vmem:[#allocation7 + $0x10] sm:$0xf]
    %v54 = vld [vmem:[#allocation7 + $0x14] sm:$0xf]
    %v55 = vld [vmem:[#allocation7 + $0x18] sm:$0xf]
    %v56 = vld [vmem:[#allocation7 + $0x1c] sm:$0xf]
    %v57 = vld [vmem:[#allocation7 + $0x20] sm:$0xf]
    %v58 = vld [vmem:[#allocation7 + $0x24] sm:$0xf]
    %v59 = vld [vmem:[#allocation7 + $0x28] sm:$0xf]
    %v60 = vld [vmem:[#allocation7 + $0x2c] sm:$0xf]
    %v61 = vld [vmem:[#allocation7 + $0x30] sm:$0xf]
    %v62 = vld [vmem:[#allocation7 + $0x34] sm:$0xf]
    %v63 = vld [vmem:[#allocation7 + $0x38] sm:$0xf]
    %v64 = vld [vmem:[#allocation7 + $0x3c] sm:$0xf]
    %v65 = vld [vmem:[%s3] sm:$0x1]
    %v67 = vlaneseq
    %v68 = vshrl.u32 %v67, 7
    %v69 = vsub.s32 0, %v68
    %v70 = vrot.slane %v65, %v69
    %v74 = vunpack.c.l.b16 %v47
    %v75 = vunpack.c.l.b16 %v48
    %v76 = vpack.c.b16 %v75, %v74
    %v94 = vunpack.c.l.b16 %v49
    %v95 = vunpack.c.l.b16 %v50
    %v96 = vunpack.c.l.b16 %v51
    %v97 = vunpack.c.l.b16 %v52
    %v98 = vunpack.c.l.b16 %v53
    %v99 = vunpack.c.l.b16 %v54
    %v100 = vunpack.c.l.b16 %v55
    %v101 = vunpack.c.l.b16 %v56
    %v102 = vunpack.c.l.b16 %v57
    %v103 = vunpack.c.l.b16 %v58
    %v104 = vunpack.c.l.b16 %v59
    %v105 = vunpack.c.l.b16 %v60
    %v106 = vunpack.c.l.b16 %v61
    %v107 = vunpack.c.l.b16 %v62
    %v108 = vunpack.c.l.b16 %v63
    %v109 = vunpack.c.l.b16 %v64
    %v110 = vpack.c.b16 %v95, %v94
    %v111 = vpack.c.b16 %v97, %v96
    %v112 = vpack.c.b16 %v99, %v98
    %v113 = vpack.c.b16 %v101, %v100
    %v114 = vpack.c.b16 %v103, %v102
    %v115 = vpack.c.b16 %v105, %v104
    %v116 = vpack.c.b16 %v107, %v106
    %v117 = vpack.c.b16 %v109, %v108
    %126 = vmatprep.subr.bf16.mxu0 0
    %127 = vmatpush1.bf16.msra.mxu0 %v117
    %128 = vmatprep.subr.bf16.mxu0 0
    %129 = vmatpush1.bf16.msra.mxu0 %v116
    %130 = vmatprep.subr.bf16.mxu0 0
    %131 = vmatpush1.bf16.msra.mxu0 %v115
    %132 = vmatprep.subr.bf16.mxu0 0
    %133 = vmatpush1.bf16.msra.mxu0 %v114
    %134 = vmatprep.subr.bf16.mxu0 0
    %135 = vmatpush1.bf16.msra.mxu0 %v113
    %136 = vmatprep.subr.bf16.mxu0 0
    %137 = vmatpush1.bf16.msra.mxu0 %v112
    %138 = vmatprep.subr.bf16.mxu0 0
    %139 = vmatpush1.bf16.msra.mxu0 %v111
    %140 = vmatprep.subr.bf16.mxu0 0
    %141 = vmatpush1.bf16.msra.mxu0 %v110
    %142 = vmatprep.subr.bf16.mxu0 0
    %143 = vmatpush2.bf16.msra.mxu0 0
    %144 = vmatprep.subr.bf16.mxu0 0
    %145 = vmatpush2.bf16.msra.mxu0 0
    %146 = vmatprep.subr.bf16.mxu0 0
    %147 = vmatpush2.bf16.msra.mxu0 0
    %148 = vmatprep.subr.bf16.mxu0 0
    %149 = vmatpush2.bf16.msra.mxu0 0
    %150 = vmatprep.subr.bf16.mxu0 0
    %151 = vmatpush2.bf16.msra.mxu0 0
    %152 = vmatprep.subr.bf16.mxu0 0
    %153 = vmatpush2.bf16.msra.mxu0 0
    %154 = vmatprep.subr.bf16.mxu0 0
    %155 = vmatpush2.bf16.msra.mxu0 0
    %156 = vmatprep.subr.bf16.mxu0 0
    %157 = vmatpush2.bf16.msra.mxu0 0
    %158 = vmatprep.mubr.bf16.mxu0 0
    %159 = vmatmul.mubr.bf16.gmra.mxu0 %v76
    %v160 = vpop.f32.mrf.mxu0
    %v161 = vadd.f32 %v70, %v160
    %v162 = vpop.f32.mrf.mxu0
    %v163 = vpop.f32.mrf.mxu0
    %v164 = vadd.f32 %v70, %v163
    %v165 = vpop.f32.mrf.mxu0
    %166 = vdwg.mxu0
    %v167 = vlaneseq
    %v168 = vshrl.u32 %v167, 7
    %v169 = vadd.s32 %v168, 8
    %s170 = smul.u32 0, 16
    %v171 = vstv %s170
    %v172 = vadd.s32 %v168, %v171
    %v173 = vadd.s32 %v169, %v171
    %v174 = vlaneseq
    %v175 = vand.u32 %v174, 127
    %s176 = smul.u32 0, 128
    %v177 = vstv %s176
    %v178 = vadd.s32 %v175, %v177
    %v179 = vmul.u32 %v172, 128
    %v180 = vmul.u32 %v173, 128
    %v181 = vadd.s32 %v179, %v178
    %v182 = vadd.s32 %v180, %v178
    %v183 = vstv %s46
    %v184 = vadd.s32 %v181, %v183
    %v185 = vadd.s32 %v182, %v183
    %v186 = vshrl.u32 %v184, 16
    %v187 = vshrl.u32 %v185, 16
    %v188 = vxor.u32 %v184, %v186
    %v189 = vxor.u32 %v185, %v187
    %v190 = vmul.u32 %v188, 2246822507
    %v191 = vmul.u32 %v189, 2246822507
    %v192 = vshrl.u32 %v190, 13
    %v193 = vshrl.u32 %v191, 13
    %v194 = vxor.u32 %v190, %v192
    %v195 = vxor.u32 %v191, %v193
    %v196 = vmul.u32 %v194, 3266489909
    %v197 = vmul.u32 %v195, 3266489909
    %v198 = vshrl.u32 %v196, 16
    %v199 = vshrl.u32 %v197, 16
    %v200 = vxor.u32 %v196, %v198
    %v201 = vxor.u32 %v197, %v199
    %vm202 = vcmp.ge.u32.totalorder %v200, 2147483648
    %vm203 = vcmp.ge.u32.totalorder %v201, 2147483648
    %v204 = vsel %vm202, %v161, 0.0
    %v205 = vsel %vm203, %v164, 0.0
    %v206 = vmul.f32 %v204, 2.0
    %v207 = vmul.f32 %v205, 2.0
    %208 = vst [vmem:[#allocation9] sm:$0xff] %v206
    %209 = vst [vmem:[#allocation9 + $0x8] sm:$0xff] %v207
    // Predicated region
    $region22: #{tpu_custom_call.1} parent=1 // pred_check
      _
    $region23: #{tpu_custom_call.1} parent=1 // pred_check_branch
      %211 = sbr.rel (0) target = $region25
    $region24: #{tpu_custom_call.1} parent=1 // pred_region
      %s213 = ssub.s32 256, 256
      %214 = vsyncadd [#allocation6], %s213
      %s215 = sshll.u32 [#allocation9], 4
      %s216 = int_to_ptr.vmem [resolvable:$true] %s215
      %221 = dma.vmem_to_hbm [thread:$0]  %s216, 256, %s4, [#allocation6], 128, 128, 8
    $region25: #{tpu_custom_call.1} parent=1 // pred_fallthru
      _
    // Predicated region
    $region26: #{tpu_custom_call.1} parent=1 // pred_check
      _
    $region27: #{tpu_custom_call.1} parent=1 // pred_check_branch
      %223 = sbr.rel (0) target = $region29
    $region28: #{tpu_custom_call.1} parent=1 // pred_region
      %224 = dma.done [#allocation6], 256
    $region29: #{tpu_custom_call.1} parent=1 // pred_fallthru
      _
    %225 = vsyncpa [#allocation5], 1
    %226 = vsyncpa [#allocation8], 1
    %227 = vsyncpa [#allocation6], 1

</llo_original>
